<compile_context>
chip_gen: v7x
topology: tpu7x:2x2x1
jax: 0.10.0
libtpu: 0.0.40
codegen_flags: <defaults>
</compile_context>

<pallas_src>
import math
from dataclasses import dataclass
from typing import Union

import jax
import jax.numpy as jnp
from jax.experimental import pallas as pl
from jax.experimental.pallas import tpu as pltpu


@dataclass
class ModelArgs:
    d_model: int
    n_layer: int
    vocab_size: int
    d_state: int = 16
    expand: int = 2
    dt_rank: Union[int, str] = 'auto'
    d_conv: int = 4
    pad_vocab_size_multiple: int = 8
    conv_bias: bool = True
    bias: bool = False
    output_dim: int = 1
    input_dim: int = 1
    embedding_dim: int = 1

    def __post_init__(self):
        self.d_inner = int(self.expand * self.d_model)
        if self.dt_rank == 'auto':
            self.dt_rank = math.ceil(self.d_model / 16)
        if self.vocab_size % self.pad_vocab_size_multiple != 0:
            self.vocab_size += (self.pad_vocab_size_multiple
                                - self.vocab_size % self.pad_vocab_size_multiple)


NUM_EMBEDDINGS = 100   # nn.Embedding(num_embeddings=100, ...)
MASK_VALUE = 0         # PyTorch mask step: (x != 0) * x  -> identity
V_PAD = 128            # vocab padded to one full lane row
LANE = 128

# The kernel omits the mask compute; that is only valid while mask_value == 0.
assert MASK_VALUE == 0, "kernel omits the mask; only correct for mask_value == 0"


def _round_up(n, m):
    return ((n + m - 1) // m) * m


# --------------------------------------------------------------------------
# Kernels.  Per grid step:
#   ids_ref:   [TM, 128] int32   (sublane-dense token ids)
#   table_ref: [1, 128]  float32 (resident folded table)   [gather kernel]
#              [128]     float32 in SMEM                   [select fallback]
#   out_ref:   [TM, 128] float32
# --------------------------------------------------------------------------
def _gather_kernel(ids_ref, table_ref, out_ref):
    """out[m, l] = table[0, ids[m, l]] via an XLU dynamic lane gather."""
    ids = ids_ref[...]                                        # [TM, 128] int32
    table = jnp.broadcast_to(table_ref[...], ids.shape)       # [TM, 128] f32
    out_ref[...] = jnp.take_along_axis(table, ids, axis=-1)   # lane gather


def _select_kernel(ids_ref, table_smem_ref, out_ref):
    """Fallback: 128-step compare/select against an SMEM scalar table."""
    ids = ids_ref[...]                                        # [TM, 128] int32

    def body(v, acc):
        return jnp.where(ids == v, table_smem_ref[v], acc)

    out_ref[...] = jax.lax.fori_loop(0, V_PAD, body,
                                     jnp.zeros(ids.shape, jnp.float32))


_GATHER_SUPPORTED = None


def _lane_gather_supported():
    """Probe once whether take_along_axis lowers to a TPU dynamic lane gather."""
    global _GATHER_SUPPORTED
    if _GATHER_SUPPORTED is None:
        try:
            ids = jnp.zeros((8, LANE), jnp.int32)
            tbl = jnp.zeros((1, V_PAD), jnp.float32)
            probe = pl.pallas_call(
                _gather_kernel,
                out_shape=jax.ShapeDtypeStruct((8, LANE), jnp.float32),
                grid=(1,),
                in_specs=[pl.BlockSpec((8, LANE), lambda i: (0, 0)),
                          pl.BlockSpec((1, V_PAD), lambda i: (0, 0))],
                out_specs=pl.BlockSpec((8, LANE), lambda i: (0, 0)),
            )
            jax.jit(probe).lower(ids, tbl).compile()
            _GATHER_SUPPORTED = True
        except Exception:
            _GATHER_SUPPORTED = False
    return _GATHER_SUPPORTED


# --------------------------------------------------------------------------
# One-time parameter preprocessing (init-time, not per-forward): fold
# Embedding table, Linear weight and bias into a single [1, 128] f32 row.
# --------------------------------------------------------------------------
def fold_char_embedding_params(emb_table, w_t, b):
    """emb_table: [V, E]; w_t: [E, 1] (Linear weight transposed); b: [1]."""
    V, _ = emb_table.shape
    folded = (emb_table.astype(jnp.float32) @ w_t.astype(jnp.float32)
              + b.astype(jnp.float32).reshape(1, 1)).reshape(V)       # [V]
    folded_pad = jnp.zeros((V_PAD,), jnp.float32).at[:V].set(folded)
    # NOTE: ids in [V, 128) would read this zero padding whereas the reference
    # jnp.take clamps — only differs for invalid inputs (valid ids are < 100).
    return folded_pad.reshape(1, V_PAD)                               # [1, 128]


# --------------------------------------------------------------------------
# Forward wrapper.
# --------------------------------------------------------------------------
def char_embedding_forward(char_input, folded_table_row, *, tm=512):
    """char_input: [B, S, 1] int; folded_table_row: [1, 128] f32 -> [B, S, 1] f32."""
    x = jnp.squeeze(char_input, axis=-1).astype(jnp.int32)            # [B, S]
    B, S = x.shape
    N = B * S

    rows = pl.cdiv(N, LANE)
    rows8 = _round_up(rows, 8)
    tm_eff = min(tm, rows8)
    # Keep >= 2 grid steps when there is enough work: v7x has 2 TensorCores
    # and a single-step grid leaves one idle (no-op on v5e/v6e).
    if rows8 // tm_eff < 2 and rows8 >= 16:
        tm_eff = _round_up(max(rows8 // 2, 8), 8)
    rows_pad = _round_up(rows8, tm_eff)
    n_pad = rows_pad * LANE
    grid = (rows_pad // tm_eff,)

    # Sublane-dense (rows, 128) id layout.  Padded tail ids are 0; they gather
    # folded[0] (harmless garbage) and are sliced off below.
    # TODO(synk): for very large inputs fold the pad/slice copies into the
    # kernel (masked store on the ragged last tile) to halve wrapper HBM traffic.
    ids2d = jnp.pad(x.reshape(-1), (0, n_pad - N)).reshape(rows_pad, LANE)

    cost = pl.CostEstimate(flops=0, transcendentals=0,
                           bytes_accessed=8 * int(n_pad))   # 4 B ids + 4 B out
    cparams = pltpu.CompilerParams(dimension_semantics=("parallel",))
    io_spec = pl.BlockSpec((tm_eff, LANE), lambda i: (i, 0))

    if _lane_gather_supported():
        out2d = pl.pallas_call(
            _gather_kernel,
            out_shape=jax.ShapeDtypeStruct((rows_pad, LANE), jnp.float32),
            grid=grid,
            in_specs=[io_spec,
                      pl.BlockSpec((1, V_PAD), lambda i: (0, 0))],    # resident
            out_specs=io_spec,
            compiler_params=cparams,
            cost_estimate=cost,
        )(ids2d, folded_table_row)
    else:
        out2d = pl.pallas_call(
            _select_kernel,
            out_shape=jax.ShapeDtypeStruct((rows_pad, LANE), jnp.float32),
            grid=grid,
            in_specs=[io_spec,
                      pl.BlockSpec(memory_space=pltpu.MemorySpace.SMEM)],
            out_specs=io_spec,
            compiler_params=cparams,
            cost_estimate=cost,
        )(ids2d, folded_table_row.reshape(V_PAD))

    return out2d.reshape(-1)[:N].reshape(B, S, 1)


# --------------------------------------------------------------------------
# Pure-JAX reference (mirrors the PyTorch module exactly).
# --------------------------------------------------------------------------
def reference_forward(char_input, emb_table, w_t, b):
    x = jnp.squeeze(char_input, axis=-1).astype(jnp.int32)
    mask = (x != MASK_VALUE).astype(jnp.float32)
    x = x * mask.astype(jnp.int32)
    e = jnp.take(emb_table, x, axis=0)                       # [B, S, E]
    return e @ w_t + b.reshape(1, 1, 1)                      # [B, S, 1]


if __name__ == "__main__":
    args = ModelArgs(d_model=32, n_layer=1, vocab_size=100, embedding_dim=16)

    key = jax.random.PRNGKey(0)
    k_ids, k_emb, k_w, k_b, k_ids2 = jax.random.split(key, 5)

    # Deterministic parameters (shapes match nn.Embedding(100, E) / nn.Linear(E, 1)).
    emb_table = jax.random.normal(k_emb, (NUM_EMBEDDINGS, args.embedding_dim),
                                  dtype=jnp.float32)
    bound = 1.0 / math.sqrt(args.embedding_dim)
    w_t = jax.random.uniform(k_w, (args.embedding_dim, 1), jnp.float32, -bound, bound)
    b = jax.random.uniform(k_b, (1,), jnp.float32, -bound, bound)

    # One-time fold (init-time, not per-forward).
    folded_row = jax.block_until_ready(fold_char_embedding_params(emb_table, w_t, b))

    # Small example consistent with the module: char_input [B, S, 1] int ids.
    B, S = 2, 8
    char_input = jax.random.randint(k_ids, (B, S, 1), 0, NUM_EMBEDDINGS,
                                    dtype=jnp.int32)
    out = jax.block_until_ready(char_embedding_forward(char_input, folded_row))
    ref = reference_forward(char_input, emb_table, w_t, b)
    assert out.shape == (B, S, 1), out.shape
    assert jnp.allclose(out, ref, atol=1e-5, rtol=1e-5), \
        f"max err {jnp.max(jnp.abs(out - ref))}"

    # Second check: ragged size -> padded rows, multi-step grid.
    B2, S2 = 4, 300
    char_input2 = jax.random.randint(k_ids2, (B2, S2, 1), 0, NUM_EMBEDDINGS,
                                     dtype=jnp.int32)
    out2 = jax.block_until_ready(char_embedding_forward(char_input2, folded_row))
    ref2 = reference_forward(char_input2, emb_table, w_t, b)
    assert out2.shape == (B2, S2, 1), out2.shape
    assert jnp.allclose(out2, ref2, atol=1e-5, rtol=1e-5), \
        f"max err {jnp.max(jnp.abs(out2 - ref2))}"

    print("KERNEL_OK")
</pallas_src>

<mosaic_0001>
module attributes {stable_mosaic.version = 11 : i64} {
  func.func @_select_kernel(%arg0: i32, %arg1: memref<8x128xi32, #tpu.memory_space<vmem>>, %arg2: memref<128xf32, #tpu.memory_space<smem>>, %arg3: memref<8x128xf32, #tpu.memory_space<vmem>>) attributes {dimension_semantics = [#tpu.dimension_semantics<parallel>], iteration_bounds = array<i64: 1>, scalar_prefetch = 0 : i64, scratch_operands = 0 : i64, tpu.core_type = #tpu.core_type<tc>, window_params = [{transform_indices = @transform_0, window_bounds = array<i64: 8, 128>}, {transform_indices = @transform_1, window_bounds = array<i64: 128>}, {transform_indices = @transform_2, window_bounds = array<i64: 8, 128>}]} {
    %c0 = arith.constant 0 : index
    %c0_0 = arith.constant 0 : index
    %0 = vector.load %arg1[%c0, %c0_0] : memref<8x128xi32, #tpu.memory_space<vmem>>, vector<8x128xi32>
    %cst = arith.constant 0.000000e+00 : f32
    %1 = vector.broadcast %cst : f32 to vector<8x128xf32>
    %c0_i32 = arith.constant 0 : i32
    %c128_i32 = arith.constant 128 : i32
    %2 = arith.addi %c0_i32, %c128_i32 : i32
    %c1_i32 = arith.constant 1 : i32
    %3 = scf.for %arg4 = %c0_i32 to %2 step %c1_i32 iter_args(%arg5 = %1) -> (vector<8x128xf32>)  : i32 {
      %5 = vector.broadcast %arg4 : i32 to vector<8x128xi32>
      %6 = arith.cmpi eq, %0, %5 : vector<8x128xi32>
      %7 = arith.index_cast %arg4 : i32 to index
      %8 = memref.load %arg2[%7] : memref<128xf32, #tpu.memory_space<smem>>
      %9 = vector.broadcast %8 : f32 to vector<8x128xf32>
      %10 = arith.select %6, %9, %arg5 : vector<8x128xi1>, vector<8x128xf32>
      scf.yield %10 : vector<8x128xf32>
    }
    %c128_i32_1 = arith.constant 128 : i32
    %c0_2 = arith.constant 0 : index
    %c0_3 = arith.constant 0 : index
    %4 = vector.load %arg3[%c0_2, %c0_3] : memref<8x128xf32, #tpu.memory_space<vmem>>, vector<8x128xf32>
    tpu.vector_store %arg3[%c0_2, %c0_3], %3 {strides = array<i32>} : memref<8x128xf32, #tpu.memory_space<vmem>>, vector<8x128xf32>,
    return
  }
  func.func @transform_0(%arg0: i32) -> (i32, i32) {
    %c0_i32 = arith.constant 0 : i32
    %c0_i32_0 = arith.constant 0 : i32
    return %arg0, %c0_i32 : i32, i32
  }
  func.func @transform_1(%arg0: i32) -> i32 {
    %c0_i32 = arith.constant 0 : i32
    %c0_i32_0 = arith.constant 0 : i32
    return %c0_i32 : i32
  }
  func.func @transform_2(%arg0: i32) -> (i32, i32) {
    %c0_i32 = arith.constant 0 : i32
    %c0_i32_0 = arith.constant 0 : i32
    return %arg0, %c0_i32 : i32, i32
  }
}

</mosaic_0001>

<llo_original>
// kernel: tpu_custom_call.1
$region0: #{tpu_custom_call.1}
  #allocation0 [shape = 'u32[]', space=smem, size = 0x4, offset = 0x4, fixed_abs, tag = 'smem constant byte address 0x4 - core index']
  #allocation1 [shape = 'u32[144,128]{1,0:T(1,128)}', space=vmem, size = 0x12000, scoped, tag = 'internal scratch']
  %s0 = inlined_call_operand.hbm [shape: s32[8,128], index: 0, kind: input, shape index: {}]
  %s1 = inlined_call_operand.vmem [shape: f32[128], index: 1, kind: input, shape index: {}]
  %s2 = inlined_call_operand.hbm [shape: f32[8,128], index: 2, kind: output, shape index: {}]
  %s3 = sld [smem:[#allocation0]]
  $region33: #{tpu_custom_call.1} parent=0
    _
  %s5 = ssub.s32 1, %s3
  %s6 = scalar_select 0, %s5, %s3
  $region1: #{tpu_custom_call.1} parent=0
    #allocation2 [shape = 'u8[4096]{0}', space=vmem, size = 0x1000, scoped, tag = 'input window, operand 0, single buffered']
    #allocation3 [shape = 's32[1]{0}', space=sflag, size = 0x4, scoped, tag = 'scoped memory for tpu_custom_call.1']
    #allocation4 [shape = 's32[1]{0}', space=sflag, size = 0x4, scoped, tag = 'scoped memory for tpu_custom_call.1']
    #allocation5 [shape = 's32[1]{0}', space=sflag, size = 0x4, scoped, tag = 'scoped memory for tpu_custom_call.1']
    #allocation6 [shape = 'u8[512]{0}', space=smem, size = 0x200, scoped, tag = 'input window, operand 1, single buffered']
    #allocation7 [shape = 'u8[4096]{0}', space=vmem, size = 0x1000, scoped, tag = 'output window, operand 0, single buffered']
    %7 = vsyncpa [#allocation3], 0
    %8 = vsyncpa [#allocation5], 0
    %9 = vsyncpa [#allocation4], 0
    // Predicated region
    $region2: #{tpu_custom_call.1} parent=1 // pred_check
      _
    $region3: #{tpu_custom_call.1} parent=1 // pred_check_branch
      %11 = sbr.rel (0) target = $region5
    $region4: #{tpu_custom_call.1} parent=1 // pred_region
      %s13 = ssub.s32 128, 128
      %14 = vsyncadd [#allocation3], %s13
      %s16 = sshll.u32 [#allocation2], 4
      %s17 = int_to_ptr.vmem [resolvable:$true] %s16
      %19 = dma.hbm_to_vmem [thread:$0]  %s0, 128, %s17, [#allocation3]
    $region5: #{tpu_custom_call.1} parent=1 // pred_fallthru
      _
    // Predicated region
    $region6: #{tpu_custom_call.1} parent=1 // pred_check
      _
    $region7: #{tpu_custom_call.1} parent=1 // pred_check_branch
      %21 = sbr.rel (0) target = $region9
    $region8: #{tpu_custom_call.1} parent=1 // pred_region
      %s23 = ssub.s32 16, 16
      %24 = vsyncadd [#allocation5], %s23
      %s26 = sshll.u32 %s1, 4
      %s27 = int_to_ptr.vmem [resolvable:$true] %s26
      %29 = dma.vmem_to_smem %s27, 16, [#allocation6], [#allocation5]
    $region9: #{tpu_custom_call.1} parent=1 // pred_fallthru
      _
    // Predicated region
    $region10: #{tpu_custom_call.1} parent=1 // pred_check
      _
    $region11: #{tpu_custom_call.1} parent=1 // pred_check_branch
      %31 = sbr.rel (0) target = $region13
    $region12: #{tpu_custom_call.1} parent=1 // pred_region
      %32 = dma.done [#allocation3], 128
    $region13: #{tpu_custom_call.1} parent=1 // pred_fallthru
      _
    // Predicated region
    $region14: #{tpu_custom_call.1} parent=1 // pred_check
      _
    $region15: #{tpu_custom_call.1} parent=1 // pred_check_branch
      %34 = sbr.rel (0) target = $region17
    $region16: #{tpu_custom_call.1} parent=1 // pred_region
      %35 = dma.done [#allocation5], 16
    $region17: #{tpu_custom_call.1} parent=1 // pred_fallthru
      _
    %36 = sfence
    %v37 = vld [vmem:[#allocation2] sm:$0xff]
    loop: start=0, step=1, limit=128
    $region18: #{tpu_custom_call.1} parent=1 // loop_pre_header
      _
    $region19: #{tpu_custom_call.1} parent=1 // loop_header
      %s39 = sphi 0, %s43
      %p40 = scmp.ge.s32.totalorder %s39, 128
      %v44 = vphi 0.0, %v49
    $region20: #{tpu_custom_call.1} parent=1 // loop_header_branch
      %42 = sbr.rel (%p40) target = $region24
    $region21: #{tpu_custom_call.1} parent=1 // loop_body
      %v45 = vstv %s39
      %vm46 = vcmp.eq.s32.totalorder %v37, %v45
      %s47 = sld [smem:[#allocation6 + %s39]]
      %v48 = vstv %s47
      %v49 = vsel %vm46, %v48, %v44
    $region22: #{tpu_custom_call.1} parent=1 // loop_footer
      %s43 = sadd.s32 1, %s39
    $region23: #{tpu_custom_call.1} parent=1 // loop_footer_branch
      %38 = sbr.rel target = $region19
    $region24: #{tpu_custom_call.1} parent=1 // loop_exit
      _
    %50 = vst [vmem:[#allocation7] sm:$0xff] %v44
    // Predicated region
    $region25: #{tpu_custom_call.1} parent=1 // pred_check
      _
    $region26: #{tpu_custom_call.1} parent=1 // pred_check_branch
      %52 = sbr.rel (0) target = $region28
    $region27: #{tpu_custom_call.1} parent=1 // pred_region
      %s54 = ssub.s32 128, 128
      %55 = vsyncadd [#allocation4], %s54
      %s57 = sshll.u32 [#allocation7], 4
      %s58 = int_to_ptr.vmem [resolvable:$true] %s57
      %60 = dma.vmem_to_hbm [thread:$0]  %s58, 128, %s2, [#allocation4]
    $region28: #{tpu_custom_call.1} parent=1 // pred_fallthru
      _
    // Predicated region
    $region29: #{tpu_custom_call.1} parent=1 // pred_check
      _
    $region30: #{tpu_custom_call.1} parent=1 // pred_check_branch
      %62 = sbr.rel (0) target = $region32
    $region31: #{tpu_custom_call.1} parent=1 // pred_region
      %63 = dma.done [#allocation4], 128
    $region32: #{tpu_custom_call.1} parent=1 // pred_fallthru
      _
    %64 = vsyncpa [#allocation3], 1
    %65 = vsyncpa [#allocation4], 1
    %66 = vsyncpa [#allocation5], 1

</llo_original>
